<compile_context>
chip_gen: v5e
topology: v5e:2x2
jax: 0.10.0
libtpu: 0.0.40
codegen_flags: <defaults>
</compile_context>

<pallas_src>
import functools

import jax
import jax.numpy as jnp
from jax.experimental import pallas as pl
from jax.experimental.pallas import tpu as pltpu

LANE = 128
MAX_TILE_ROWS = 4096   # (4096, 128) f32 = 2 MiB per input per buffer
NUM_SLICES = 2         # leading "parallel" axis -> both TensorCores on v7x

BCE_WEIGHT = 0.5
TOPOLOGY_WEIGHT = 1.0


def _round_up(x, m):
    return (x + m - 1) // m * m


def _partial_sums_kernel(p_ref, t_ref, out_ref, acc_ref, *, valid_rows):
    """Accumulates per-slice partial sums of (p*t, p+t, -BCE) over row tiles."""
    c = pl.program_id(0)          # "parallel" slice (megacore split on v7x)
    i = pl.program_id(1)          # "arbitrary" reduction axis over row tiles
    tile_rows, lane = p_ref.shape
    groups = tile_rows // 8       # tile_rows is always a multiple of 8

    @pl.when(i == 0)
    def _init():
        acc_ref[...] = jnp.zeros_like(acc_ref)

    # Unclamped block id: overflow / clamped-duplicate steps (when the tile
    # count does not split evenly across slices) get row0 >= valid_rows and
    # take the fully-masked tail path, contributing exactly 0.
    block = c * pl.num_programs(1) + i
    row0 = block * tile_rows
    is_interior = row0 + tile_rows <= valid_rows

    def accumulate(p, t):
        # torch.nn.functional.binary_cross_entropy clamps log at -100.
        log_p = jnp.maximum(jnp.log(p), -100.0)
        log_1mp = jnp.maximum(jnp.log(1.0 - p), -100.0)
        nbce = log_1mp + t * (log_p - log_1mp)   # == -(t*log p + (1-t)*log(1-p))

        def fold(x):
            # (tile_rows, 128) -> (8, 128): vreg-wise VALU adds only (no XLU).
            return jnp.sum(x.reshape(groups, 8, lane), axis=0)

        acc_ref[0] += fold(p * t)
        acc_ref[1] += fold(p + t)
        acc_ref[2] += fold(nbce)

    @pl.when(is_interior)
    def _interior():
        # Fast path: no masking work on interior tiles.
        accumulate(p_ref[...].astype(jnp.float32),
                   t_ref[...].astype(jnp.float32))

    @pl.when(jnp.logical_not(is_interior))
    def _tail():
        row_ids = (jax.lax.broadcasted_iota(jnp.int32, (tile_rows, lane), 0)
                   + row0)
        valid = row_ids < valid_rows
        # Masked elements become 0 (p = t = 0 contributes 0 to every sum);
        # boundary-padded garbage never reaches the log.
        p = jnp.where(valid, p_ref[...].astype(jnp.float32), 0.0)
        t = jnp.where(valid, t_ref[...].astype(jnp.float32), 0.0)
        accumulate(p, t)

    @pl.when(i == pl.num_programs(1) - 1)
    def _finalize():
        out_ref[0] = acc_ref[...]


def dice_bce_topology_loss(inputs, targets, smooth=1.0,
                           bce_weight=BCE_WEIGHT,
                           topology_weight=TOPOLOGY_WEIGHT):
    """Pallas implementation of DiceBCELossWithTopology.forward.

    Note: the topology term (connected-component counting) is taken as 0; see
    the TODO below.
    """
    n_total = inputs.size
    assert targets.size == n_total

    # Keep native dtypes (no f32 up-cast copies through HBM). Flatten row-major
    # and view as (rows, 128) so the last dim maps to vreg lanes.
    p_flat = inputs.reshape(-1)
    t_flat = targets.reshape(-1)
    pad = (-n_total) % LANE
    if pad:
        # TODO(synk): rare host-side pad (one extra HBM pass) when the element
        # count is not a multiple of 128; zero padding (p = t = 0) contributes
        # exactly 0 to every partial sum, so the loss is unchanged.
        p_flat = jnp.pad(p_flat, (0, pad))
        t_flat = jnp.pad(t_flat, (0, pad))
    rows = p_flat.size // LANE
    p2d = p_flat.reshape(rows, LANE)
    t2d = t_flat.reshape(rows, LANE)

    # Tile rows: multiple of 8 (sublane-safe for the in-kernel fold), capped at
    # MAX_TILE_ROWS. Boundary / overhang rows are masked in-kernel.
    tile_rows = min(MAX_TILE_ROWS, _round_up(rows, 8))
    num_blocks = pl.cdiv(rows, tile_rows)
    num_slices = max(1, min(NUM_SLICES, num_blocks))
    inner_steps = pl.cdiv(num_blocks, num_slices)

    def in_index(c, i):
        # Clamp overflow steps (tiles not splitting evenly across slices) onto
        # a valid tile; their rows are fully masked inside the kernel.
        return (jnp.minimum(c * inner_steps + i, num_blocks - 1), 0)

    kernel = functools.partial(_partial_sums_kernel, valid_rows=rows)

    partials = pl.pallas_call(
        kernel,
        out_shape=jax.ShapeDtypeStruct((num_slices, 3, 8, LANE), jnp.float32),
        grid_spec=pltpu.PrefetchScalarGridSpec(
            num_scalar_prefetch=0,
            grid=(num_slices, inner_steps),
            in_specs=[
                pl.BlockSpec((tile_rows, LANE), in_index),
                pl.BlockSpec((tile_rows, LANE), in_index),
            ],
            out_specs=pl.BlockSpec((1, 3, 8, LANE), lambda c, i: (c, 0, 0, 0)),
            scratch_shapes=[pltpu.VMEM((3, 8, LANE), jnp.float32)],
        ),
        compiler_params=pltpu.CompilerParams(
            dimension_semantics=("parallel", "arbitrary"),
            vmem_limit_bytes=32 * 1024 * 1024),
    )(p2d, t2d)

    # Combine the tiny per-slice partials and finish the scalar loss math.
    inter = jnp.sum(partials[:, 0])
    pt_sum = jnp.sum(partials[:, 1])           # sum(p) + sum(t)
    nbce_sum = jnp.sum(partials[:, 2])         # -(sum of elementwise BCE)

    dice_loss = 1.0 - (2.0 * inter + smooth) / (pt_sum + smooth)
    bce_mean = -nbce_sum / float(n_total)

    # TODO(synk): connected-component counting (skimage.measure.label) is a
    # data-dependent CPU graph traversal with no Pallas equivalent; the
    # topology term is taken as 0 here.
    topo_loss = 0.0

    return bce_mean * bce_weight + dice_loss + topo_loss * topology_weight


def _reference_loss(inputs, targets, smooth=1.0):
    p = inputs.reshape(-1).astype(jnp.float32)
    t = targets.reshape(-1).astype(jnp.float32)
    intersection = jnp.sum(p * t)
    dice = 1.0 - (2.0 * intersection + smooth) / (jnp.sum(p) + jnp.sum(t) + smooth)
    log_p = jnp.maximum(jnp.log(p), -100.0)
    log_1mp = jnp.maximum(jnp.log(1.0 - p), -100.0)
    bce = jnp.mean(-(t * log_p + (1.0 - t) * log_1mp))
    return bce * BCE_WEIGHT + dice + 0.0 * TOPOLOGY_WEIGHT


if __name__ == "__main__":
    key = jax.random.PRNGKey(0)
    k1, k2 = jax.random.split(key)

    # NCHW, small shapes: batch=2, channels=4, spatial=16x16.
    x_shape = (2, 4, 16, 16)
    logits = jax.random.normal(k1, x_shape, dtype=jnp.float32)
    inputs = jax.nn.sigmoid(logits)                       # probabilities in (0,1)
    targets = (jax.random.uniform(k2, x_shape) > 0.5).astype(jnp.float32)

    loss = dice_bce_topology_loss(inputs, targets)
    loss = jax.block_until_ready(loss)

    ref = _reference_loss(inputs, targets)
    assert jnp.allclose(loss, ref, rtol=1e-5, atol=1e-5), (loss, ref)

    print("KERNEL_OK")
</pallas_src>

<mosaic_0001>
module attributes {stable_mosaic.version = 11 : i64} {
  func.func @_partial_sums_kernel(%arg0: i32, %arg1: i32, %arg2: memref<16x128xf32, #tpu.memory_space<vmem>>, %arg3: memref<16x128xf32, #tpu.memory_space<vmem>>, %arg4: memref<1x3x8x128xf32, #tpu.memory_space<vmem>>, %arg5: memref<3x8x128xf32, #tpu.memory_space<vmem>>) attributes {dimension_semantics = [#tpu.dimension_semantics<parallel>, #tpu.dimension_semantics<arbitrary>], iteration_bounds = array<i64: 1, 1>, scalar_prefetch = 0 : i64, scratch_operands = 1 : i64, tpu.core_type = #tpu.core_type<tc>, window_params = [{transform_indices = @transform_0, window_bounds = array<i64: 16, 128>}, {transform_indices = @transform_1, window_bounds = array<i64: 16, 128>}, {transform_indices = @transform_2, window_bounds = array<i64: 1, 3, 8, 128>}]} {
    %c0_i32 = arith.constant 0 : i32
    %0 = arith.cmpi eq, %arg1, %c0_i32 : i32
    %1 = arith.extui %0 : i1 to i32
    %c0_i32_0 = arith.constant 0 : i32
    %2 = arith.cmpi ne, %1, %c0_i32_0 : i32
    scf.if %2 {
      %cst = arith.constant 0.000000e+00 : f32
      %16 = vector.broadcast %cst : f32 to vector<3x8x128xf32>
      %c0 = arith.constant 0 : index
      %c0_7 = arith.constant 0 : index
      %c0_8 = arith.constant 0 : index
      %17 = vector.load %arg5[%c0, %c0_7, %c0_8] : memref<3x8x128xf32, #tpu.memory_space<vmem>>, vector<3x8x128xf32>
      tpu.vector_store %arg5[%c0, %c0_7, %c0_8], %16 {strides = array<i32>} : memref<3x8x128xf32, #tpu.memory_space<vmem>>, vector<3x8x128xf32>,
    } else {
    }
    %c1_i32 = arith.constant 1 : i32
    %3 = arith.muli %arg0, %c1_i32 : i32
    %4 = arith.addi %3, %arg1 : i32
    %c16_i32 = arith.constant 16 : i32
    %5 = arith.muli %4, %c16_i32 : i32
    %c16_i32_1 = arith.constant 16 : i32
    %6 = arith.addi %5, %c16_i32_1 : i32
    %c16_i32_2 = arith.constant 16 : i32
    %7 = arith.cmpi sle, %6, %c16_i32_2 : i32
    %8 = arith.extui %7 : i1 to i32
    %c0_i32_3 = arith.constant 0 : i32
    %9 = arith.cmpi ne, %8, %c0_i32_3 : i32
    scf.if %9 {
      %c0 = arith.constant 0 : index
      %c0_7 = arith.constant 0 : index
      %16 = vector.load %arg2[%c0, %c0_7] : memref<16x128xf32, #tpu.memory_space<vmem>>, vector<16x128xf32>
      %c0_8 = arith.constant 0 : index
      %c0_9 = arith.constant 0 : index
      %17 = vector.load %arg3[%c0_8, %c0_9] : memref<16x128xf32, #tpu.memory_space<vmem>>, vector<16x128xf32>
      %18 = math.log %16 : vector<16x128xf32>
      %cst = arith.constant -1.000000e+02 : f32
      %19 = vector.broadcast %cst : f32 to vector<16x128xf32>
      %20 = arith.maximumf %18, %19 : vector<16x128xf32>
      %cst_10 = arith.constant 1.000000e+00 : f32
      %21 = vector.broadcast %cst_10 : f32 to vector<16x128xf32>
      %22 = arith.subf %21, %16 : vector<16x128xf32>
      %23 = math.log %22 : vector<16x128xf32>
      %cst_11 = arith.constant -1.000000e+02 : f32
      %24 = vector.broadcast %cst_11 : f32 to vector<16x128xf32>
      %25 = arith.maximumf %23, %24 : vector<16x128xf32>
      %26 = arith.subf %20, %25 : vector<16x128xf32>
      %27 = arith.mulf %17, %26 : vector<16x128xf32>
      %28 = arith.addf %25, %27 : vector<16x128xf32>
      %c0_12 = arith.constant 0 : index
      %c0_13 = arith.constant 0 : index
      %c0_14 = arith.constant 0 : index
      %29 = vector.load %arg5[%c0_12, %c0_13, %c0_14] : memref<3x8x128xf32, #tpu.memory_space<vmem>>, vector<1x8x128xf32>
      %30 = vector.shape_cast %29 : vector<1x8x128xf32> to vector<8x128xf32>
      %31 = arith.mulf %16, %17 : vector<16x128xf32>
      %32 = vector.shape_cast %31 : vector<16x128xf32> to vector<2x8x128xf32>
      %cst_15 = arith.constant dense<0.000000e+00> : vector<8x128xf32>
      %33 = vector.multi_reduction <add>, %32, %cst_15 [0] : vector<2x8x128xf32> to vector<8x128xf32>
      %34 = arith.addf %30, %33 : vector<8x128xf32>
      %c0_16 = arith.constant 0 : index
      %c0_17 = arith.constant 0 : index
      %c0_18 = arith.constant 0 : index
      %35 = vector.load %arg5[%c0_16, %c0_17, %c0_18] : memref<3x8x128xf32, #tpu.memory_space<vmem>>, vector<1x8x128xf32>
      %36 = vector.shape_cast %35 : vector<1x8x128xf32> to vector<8x128xf32>
      %37 = vector.shape_cast %34 : vector<8x128xf32> to vector<1x8x128xf32>
      tpu.vector_store %arg5[%c0_16, %c0_17, %c0_18], %37 {strides = array<i32>} : memref<3x8x128xf32, #tpu.memory_space<vmem>>, vector<1x8x128xf32>,
      %c1 = arith.constant 1 : index
      %c0_19 = arith.constant 0 : index
      %c0_20 = arith.constant 0 : index
      %38 = vector.load %arg5[%c1, %c0_19, %c0_20] : memref<3x8x128xf32, #tpu.memory_space<vmem>>, vector<1x8x128xf32>
      %39 = vector.shape_cast %38 : vector<1x8x128xf32> to vector<8x128xf32>
      %40 = arith.addf %16, %17 : vector<16x128xf32>
      %41 = vector.shape_cast %40 : vector<16x128xf32> to vector<2x8x128xf32>
      %cst_21 = arith.constant dense<0.000000e+00> : vector<8x128xf32>
      %42 = vector.multi_reduction <add>, %41, %cst_21 [0] : vector<2x8x128xf32> to vector<8x128xf32>
      %43 = arith.addf %39, %42 : vector<8x128xf32>
      %c1_22 = arith.constant 1 : index
      %c0_23 = arith.constant 0 : index
      %c0_24 = arith.constant 0 : index
      %44 = vector.load %arg5[%c1_22, %c0_23, %c0_24] : memref<3x8x128xf32, #tpu.memory_space<vmem>>, vector<1x8x128xf32>
      %45 = vector.shape_cast %44 : vector<1x8x128xf32> to vector<8x128xf32>
      %46 = vector.shape_cast %43 : vector<8x128xf32> to vector<1x8x128xf32>
      tpu.vector_store %arg5[%c1_22, %c0_23, %c0_24], %46 {strides = array<i32>} : memref<3x8x128xf32, #tpu.memory_space<vmem>>, vector<1x8x128xf32>,
      %c2 = arith.constant 2 : index
      %c0_25 = arith.constant 0 : index
      %c0_26 = arith.constant 0 : index
      %47 = vector.load %arg5[%c2, %c0_25, %c0_26] : memref<3x8x128xf32, #tpu.memory_space<vmem>>, vector<1x8x128xf32>
      %48 = vector.shape_cast %47 : vector<1x8x128xf32> to vector<8x128xf32>
      %49 = vector.shape_cast %28 : vector<16x128xf32> to vector<2x8x128xf32>
      %cst_27 = arith.constant dense<0.000000e+00> : vector<8x128xf32>
      %50 = vector.multi_reduction <add>, %49, %cst_27 [0] : vector<2x8x128xf32> to vector<8x128xf32>
      %51 = arith.addf %48, %50 : vector<8x128xf32>
      %c2_28 = arith.constant 2 : index
      %c0_29 = arith.constant 0 : index
      %c0_30 = arith.constant 0 : index
      %52 = vector.load %arg5[%c2_28, %c0_29, %c0_30] : memref<3x8x128xf32, #tpu.memory_space<vmem>>, vector<1x8x128xf32>
      %53 = vector.shape_cast %52 : vector<1x8x128xf32> to vector<8x128xf32>
      %54 = vector.shape_cast %51 : vector<8x128xf32> to vector<1x8x128xf32>
      tpu.vector_store %arg5[%c2_28, %c0_29, %c0_30], %54 {strides = array<i32>} : memref<3x8x128xf32, #tpu.memory_space<vmem>>, vector<1x8x128xf32>,
    } else {
    }
    %true = arith.constant true
    %10 = arith.xori %7, %true : i1
    %11 = arith.extui %10 : i1 to i32
    %c0_i32_4 = arith.constant 0 : i32
    %12 = arith.cmpi ne, %11, %c0_i32_4 : i32
    scf.if %12 {
      %16 = tpu.iota {dimensions = array<i32: 0>} : vector<16x128xi32>
      %17 = vector.broadcast %5 : i32 to vector<16x128xi32>
      %18 = arith.addi %16, %17 : vector<16x128xi32>
      %c16_i32_7 = arith.constant 16 : i32
      %19 = vector.broadcast %c16_i32_7 : i32 to vector<16x128xi32>
      %20 = arith.cmpi slt, %18, %19 : vector<16x128xi32>
      %c0 = arith.constant 0 : index
      %c0_8 = arith.constant 0 : index
      %21 = vector.load %arg2[%c0, %c0_8] : memref<16x128xf32, #tpu.memory_space<vmem>>, vector<16x128xf32>
      %cst = arith.constant 0.000000e+00 : f32
      %22 = vector.broadcast %cst : f32 to vector<16x128xf32>
      %23 = arith.select %20, %21, %22 : vector<16x128xi1>, vector<16x128xf32>
      %c0_9 = arith.constant 0 : index
      %c0_10 = arith.constant 0 : index
      %24 = vector.load %arg3[%c0_9, %c0_10] : memref<16x128xf32, #tpu.memory_space<vmem>>, vector<16x128xf32>
      %cst_11 = arith.constant 0.000000e+00 : f32
      %25 = vector.broadcast %cst_11 : f32 to vector<16x128xf32>
      %26 = arith.select %20, %24, %25 : vector<16x128xi1>, vector<16x128xf32>
      %27 = math.log %23 : vector<16x128xf32>
      %cst_12 = arith.constant -1.000000e+02 : f32
      %28 = vector.broadcast %cst_12 : f32 to vector<16x128xf32>
      %29 = arith.maximumf %27, %28 : vector<16x128xf32>
      %cst_13 = arith.constant 1.000000e+00 : f32
      %30 = vector.broadcast %cst_13 : f32 to vector<16x128xf32>
      %31 = arith.subf %30, %23 : vector<16x128xf32>
      %32 = math.log %31 : vector<16x128xf32>
      %cst_14 = arith.constant -1.000000e+02 : f32
      %33 = vector.broadcast %cst_14 : f32 to vector<16x128xf32>
      %34 = arith.maximumf %32, %33 : vector<16x128xf32>
      %35 = arith.subf %29, %34 : vector<16x128xf32>
      %36 = arith.mulf %26, %35 : vector<16x128xf32>
      %37 = arith.addf %34, %36 : vector<16x128xf32>
      %c0_15 = arith.constant 0 : index
      %c0_16 = arith.constant 0 : index
      %c0_17 = arith.constant 0 : index
      %38 = vector.load %arg5[%c0_15, %c0_16, %c0_17] : memref<3x8x128xf32, #tpu.memory_space<vmem>>, vector<1x8x128xf32>
      %39 = vector.shape_cast %38 : vector<1x8x128xf32> to vector<8x128xf32>
      %40 = arith.mulf %23, %26 : vector<16x128xf32>
      %41 = vector.shape_cast %40 : vector<16x128xf32> to vector<2x8x128xf32>
      %cst_18 = arith.constant dense<0.000000e+00> : vector<8x128xf32>
      %42 = vector.multi_reduction <add>, %41, %cst_18 [0] : vector<2x8x128xf32> to vector<8x128xf32>
      %43 = arith.addf %39, %42 : vector<8x128xf32>
      %c0_19 = arith.constant 0 : index
      %c0_20 = arith.constant 0 : index
      %c0_21 = arith.constant 0 : index
      %44 = vector.load %arg5[%c0_19, %c0_20, %c0_21] : memref<3x8x128xf32, #tpu.memory_space<vmem>>, vector<1x8x128xf32>
      %45 = vector.shape_cast %44 : vector<1x8x128xf32> to vector<8x128xf32>
      %46 = vector.shape_cast %43 : vector<8x128xf32> to vector<1x8x128xf32>
      tpu.vector_store %arg5[%c0_19, %c0_20, %c0_21], %46 {strides = array<i32>} : memref<3x8x128xf32, #tpu.memory_space<vmem>>, vector<1x8x128xf32>,
      %c1 = arith.constant 1 : index
      %c0_22 = arith.constant 0 : index
      %c0_23 = arith.constant 0 : index
      %47 = vector.load %arg5[%c1, %c0_22, %c0_23] : memref<3x8x128xf32, #tpu.memory_space<vmem>>, vector<1x8x128xf32>
      %48 = vector.shape_cast %47 : vector<1x8x128xf32> to vector<8x128xf32>
      %49 = arith.addf %23, %26 : vector<16x128xf32>
      %50 = vector.shape_cast %49 : vector<16x128xf32> to vector<2x8x128xf32>
      %cst_24 = arith.constant dense<0.000000e+00> : vector<8x128xf32>
      %51 = vector.multi_reduction <add>, %50, %cst_24 [0] : vector<2x8x128xf32> to vector<8x128xf32>
      %52 = arith.addf %48, %51 : vector<8x128xf32>
      %c1_25 = arith.constant 1 : index
      %c0_26 = arith.constant 0 : index
      %c0_27 = arith.constant 0 : index
      %53 = vector.load %arg5[%c1_25, %c0_26, %c0_27] : memref<3x8x128xf32, #tpu.memory_space<vmem>>, vector<1x8x128xf32>
      %54 = vector.shape_cast %53 : vector<1x8x128xf32> to vector<8x128xf32>
      %55 = vector.shape_cast %52 : vector<8x128xf32> to vector<1x8x128xf32>
      tpu.vector_store %arg5[%c1_25, %c0_26, %c0_27], %55 {strides = array<i32>} : memref<3x8x128xf32, #tpu.memory_space<vmem>>, vector<1x8x128xf32>,
      %c2 = arith.constant 2 : index
      %c0_28 = arith.constant 0 : index
      %c0_29 = arith.constant 0 : index
      %56 = vector.load %arg5[%c2, %c0_28, %c0_29] : memref<3x8x128xf32, #tpu.memory_space<vmem>>, vector<1x8x128xf32>
      %57 = vector.shape_cast %56 : vector<1x8x128xf32> to vector<8x128xf32>
      %58 = vector.shape_cast %37 : vector<16x128xf32> to vector<2x8x128xf32>
      %cst_30 = arith.constant dense<0.000000e+00> : vector<8x128xf32>
      %59 = vector.multi_reduction <add>, %58, %cst_30 [0] : vector<2x8x128xf32> to vector<8x128xf32>
      %60 = arith.addf %57, %59 : vector<8x128xf32>
      %c2_31 = arith.constant 2 : index
      %c0_32 = arith.constant 0 : index
      %c0_33 = arith.constant 0 : index
      %61 = vector.load %arg5[%c2_31, %c0_32, %c0_33] : memref<3x8x128xf32, #tpu.memory_space<vmem>>, vector<1x8x128xf32>
      %62 = vector.shape_cast %61 : vector<1x8x128xf32> to vector<8x128xf32>
      %63 = vector.shape_cast %60 : vector<8x128xf32> to vector<1x8x128xf32>
      tpu.vector_store %arg5[%c2_31, %c0_32, %c0_33], %63 {strides = array<i32>} : memref<3x8x128xf32, #tpu.memory_space<vmem>>, vector<1x8x128xf32>,
    } else {
    }
    %c0_i32_5 = arith.constant 0 : i32
    %13 = arith.cmpi eq, %arg1, %c0_i32_5 : i32
    %14 = arith.extui %13 : i1 to i32
    %c0_i32_6 = arith.constant 0 : i32
    %15 = arith.cmpi ne, %14, %c0_i32_6 : i32
    scf.if %15 {
      %c0 = arith.constant 0 : index
      %c0_7 = arith.constant 0 : index
      %c0_8 = arith.constant 0 : index
      %16 = vector.load %arg5[%c0, %c0_7, %c0_8] : memref<3x8x128xf32, #tpu.memory_space<vmem>>, vector<3x8x128xf32>
      %c0_9 = arith.constant 0 : index
      %c0_10 = arith.constant 0 : index
      %c0_11 = arith.constant 0 : index
      %c0_12 = arith.constant 0 : index
      %17 = vector.load %arg4[%c0_9, %c0_10, %c0_11, %c0_12] : memref<1x3x8x128xf32, #tpu.memory_space<vmem>>, vector<1x3x8x128xf32>
      %18 = vector.shape_cast %17 : vector<1x3x8x128xf32> to vector<3x8x128xf32>
      %19 = vector.shape_cast %16 : vector<3x8x128xf32> to vector<1x3x8x128xf32>
      tpu.vector_store %arg4[%c0_9, %c0_10, %c0_11, %c0_12], %19 {strides = array<i32>} : memref<1x3x8x128xf32, #tpu.memory_space<vmem>>, vector<1x3x8x128xf32>,
    } else {
    }
    return
  }
  func.func @transform_0(%arg0: i32, %arg1: i32) -> (i32, i32) {
    %c1_i32 = arith.constant 1 : i32
    %0 = arith.muli %arg0, %c1_i32 : i32
    %1 = arith.addi %0, %arg1 : i32
    %c0_i32 = arith.constant 0 : i32
    %2 = arith.minsi %1, %c0_i32 : i32
    %c0_i32_0 = arith.constant 0 : i32
    %c0_i32_1 = arith.constant 0 : i32
    return %2, %c0_i32_0 : i32, i32
  }
  func.func @transform_1(%arg0: i32, %arg1: i32) -> (i32, i32) {
    %c1_i32 = arith.constant 1 : i32
    %0 = arith.muli %arg0, %c1_i32 : i32
    %1 = arith.addi %0, %arg1 : i32
    %c0_i32 = arith.constant 0 : i32
    %2 = arith.minsi %1, %c0_i32 : i32
    %c0_i32_0 = arith.constant 0 : i32
    %c0_i32_1 = arith.constant 0 : i32
    return %2, %c0_i32_0 : i32, i32
  }
  func.func @transform_2(%arg0: i32, %arg1: i32) -> (i32, i32, i32, i32) {
    %c0_i32 = arith.constant 0 : i32
    %c0_i32_0 = arith.constant 0 : i32
    %c0_i32_1 = arith.constant 0 : i32
    %c0_i32_2 = arith.constant 0 : i32
    return %arg0, %c0_i32, %c0_i32_0, %c0_i32_1 : i32, i32, i32, i32
  }
}

</mosaic_0001>

<llo_original>
// kernel: tpu_custom_call.1
$region0: #{tpu_custom_call.1}
  #allocation0 [shape = 'u32[]', space=smem, size = 0x4, offset = 0x4, fixed_abs, tag = 'smem constant byte address 0x4 - core index']
  #allocation1 [shape = 'u32[72,128]{1,0:T(1,128)}', space=vmem, size = 0x9000, scoped, tag = 'internal scratch']
  #allocation2 [shape = 'f32[3,8,128]{2,1,0:T(8,128)}', space=vmem, size = 0x3000, scoped, tag = 'scratch operand']
  %s0 = inlined_call_operand.hbm [shape: f32[16,128], index: 0, kind: input, shape index: {}]
  %s1 = inlined_call_operand.hbm [shape: f32[16,128], index: 1, kind: input, shape index: {}]
  %s2 = inlined_call_operand.hbm [shape: f32[1,3,8,128], index: 2, kind: output, shape index: {}]
  %s3 = sld [smem:[#allocation0]]
  $region42: #{tpu_custom_call.1} parent=0
    _
  %s5 = ssub.s32 1, %s3
  %s6 = scalar_select 0, %s5, %s3
  $region1: #{tpu_custom_call.1} parent=0
    #allocation3 [shape = 'u8[8192]{0}', space=vmem, size = 0x2000, scoped, tag = 'input window, operand 0, single buffered']
    #allocation4 [shape = 's32[1]{0}', space=sflag, size = 0x4, scoped, tag = 'scoped memory for tpu_custom_call.1']
    #allocation5 [shape = 's32[1]{0}', space=sflag, size = 0x4, scoped, tag = 'scoped memory for tpu_custom_call.1']
    #allocation6 [shape = 'u8[8192]{0}', space=vmem, size = 0x2000, scoped, tag = 'input window, operand 1, single buffered']
    #allocation7 [shape = 's32[1]{0}', space=sflag, size = 0x4, scoped, tag = 'scoped memory for tpu_custom_call.1']
    #allocation8 [shape = 'u8[12288]{0}', space=vmem, size = 0x3000, scoped, tag = 'output window, operand 0, single buffered']
    %7 = vsyncpa [#allocation4], 0
    %8 = vsyncpa [#allocation7], 0
    %9 = vsyncpa [#allocation5], 0
    // Predicated region
    $region2: #{tpu_custom_call.1} parent=1 // pred_check
      _
    $region3: #{tpu_custom_call.1} parent=1 // pred_check_branch
      %11 = sbr.rel (0) target = $region5
    $region4: #{tpu_custom_call.1} parent=1 // pred_region
      %s12 = sadd.s32 0, 0
      %p13 = scmp.lt.s32.totalorder %s12, 0
      %s14 = scalar_select %p13, %s12, 0
      %s15 = smul.u32 2, %s14
      %17 = vsyncadd [#allocation4], 0
      %s18 = smul.addr %s15, 8
      %s19 = scalar_lea.hbm %s0, %s18
      %s20 = sshll.u32 %s19, 4
      %s21 = int_to_ptr.hbm [resolvable:$true] %s20
      %s22 = sshll.u32 [#allocation3], 4
      %s23 = int_to_ptr.vmem [resolvable:$true] %s22
      %28 = dma.hbm_to_vmem [thread:$0]  %s21, 256, %s23, [#allocation4], 128, 128, 8
    $region5: #{tpu_custom_call.1} parent=1 // pred_fallthru
      _
    // Predicated region
    $region6: #{tpu_custom_call.1} parent=1 // pred_check
      _
    $region7: #{tpu_custom_call.1} parent=1 // pred_check_branch
      %30 = sbr.rel (0) target = $region9
    $region8: #{tpu_custom_call.1} parent=1 // pred_region
      %s31 = sadd.s32 0, 0
      %p32 = scmp.lt.s32.totalorder %s31, 0
      %s33 = scalar_select %p32, %s31, 0
      %s34 = smul.u32 2, %s33
      %36 = vsyncadd [#allocation7], 0
      %s37 = smul.addr %s34, 8
      %s38 = scalar_lea.hbm %s1, %s37
      %s39 = sshll.u32 %s38, 4
      %s40 = int_to_ptr.hbm [resolvable:$true] %s39
      %s41 = sshll.u32 [#allocation6], 4
      %s42 = int_to_ptr.vmem [resolvable:$true] %s41
      %47 = dma.hbm_to_vmem [thread:$0]  %s40, 256, %s42, [#allocation7], 128, 128, 8
    $region9: #{tpu_custom_call.1} parent=1 // pred_fallthru
      _
    // Predicated region
    $region10: #{tpu_custom_call.1} parent=1 // pred_check
      _
    $region11: #{tpu_custom_call.1} parent=1 // pred_check_branch
      %49 = sbr.rel (0) target = $region13
    $region12: #{tpu_custom_call.1} parent=1 // pred_region
      %51 = dma.done [#allocation4], 256
    $region13: #{tpu_custom_call.1} parent=1 // pred_fallthru
      _
    // Predicated region
    $region14: #{tpu_custom_call.1} parent=1 // pred_check
      _
    $region15: #{tpu_custom_call.1} parent=1 // pred_check_branch
      %53 = sbr.rel (0) target = $region17
    $region16: #{tpu_custom_call.1} parent=1 // pred_region
      %55 = dma.done [#allocation7], 256
    $region17: #{tpu_custom_call.1} parent=1 // pred_fallthru
      _
    %s56 = sadd.s32 0, 0
    %p57 = scmp.lt.s32.totalorder %s56, 0
    %s58 = scalar_select %p57, %s56, 0
    %s59 = smul.u32 2, %s58
    %s60 = sadd.s32 0, 0
    %p61 = scmp.lt.s32.totalorder %s60, 0
    %s62 = scalar_select %p61, %s60, 0
    %s63 = smul.u32 2, %s62
    %p64 = scmp.eq.s32.totalorder 0, 0
    // Predicated region
    $region18: #{tpu_custom_call.1} parent=1 // pred_check
      %p65 = pneg %p64
    $region19: #{tpu_custom_call.1} parent=1 // pred_check_branch
      %67 = sbr.rel (%p65) target = $region21
    $region20: #{tpu_custom_call.1} parent=1 // pred_region
      %68 = vst [vmem:[#allocation2] sm:$0xff] 0.0
      %69 = vst [vmem:[#allocation2 + $0x8] sm:$0xff] 0.0
      %70 = vst [vmem:[#allocation2 + $0x10] sm:$0xff] 0.0
    $region21: #{tpu_custom_call.1} parent=1 // pred_fallthru
      _
    %s71 = sadd.s32 0, 0
    %s72 = smul.u32 %s71, 16
    %s73 = sadd.s32 %s72, 16
    %p74 = scmp.le.s32.totalorder %s73, 16
    // Predicated region
    $region22: #{tpu_custom_call.1} parent=1 // pred_check
      %p75 = pneg %p74
    $region23: #{tpu_custom_call.1} parent=1 // pred_check_branch
      %77 = sbr.rel (%p75) target = $region25
    $region24: #{tpu_custom_call.1} parent=1 // pred_region
      %v78 = vld [vmem:[#allocation3] sm:$0xff]
      %v79 = vld [vmem:[#allocation3 + $0x8] sm:$0xff]
      %v80 = vld [vmem:[#allocation6] sm:$0xff]
      %v81 = vld [vmem:[#allocation6 + $0x8] sm:$0xff]
      %v82 = vlog2.pop %v78
      %v83 = vmul.f32 %v82, 0.6931472
      %v84 = vlog2.pop %v79
      %v85 = vmul.f32 %v84, 0.6931472
      %v86 = vmax.f32 %v83, -100.0
      %v87 = vmax.f32 %v85, -100.0
      %v88 = vsub.f32 1.0, %v78
      %v89 = vsub.f32 1.0, %v79
      %v90 = vlog2.pop %v88
      %v91 = vmul.f32 %v90, 0.6931472
      %v92 = vlog2.pop %v89
      %v93 = vmul.f32 %v92, 0.6931472
      %v94 = vmax.f32 %v91, -100.0
      %v95 = vmax.f32 %v93, -100.0
      %v96 = vsub.f32 %v86, %v94
      %v97 = vsub.f32 %v87, %v95
      %v98 = vmul.f32 %v80, %v96
      %v99 = vmul.f32 %v81, %v97
      %v100 = vadd.f32 %v94, %v98
      %v101 = vadd.f32 %v95, %v99
      %v102 = vld [vmem:[#allocation2] sm:$0xff]
      %v103 = vmul.f32 %v78, %v80
      %v104 = vmul.f32 %v79, %v81
      %v105 = vadd.f32 %v103, %v104
      %v106 = vadd.f32 %v102, %v105
      %107 = vst [vmem:[#allocation2] sm:$0xff] %v106
      %s108 = scalar_lea.vmem [#allocation2], 8
      %v109 = vld [vmem:[%s108] sm:$0xff]
      %v110 = vadd.f32 %v78, %v80
      %v111 = vadd.f32 %v79, %v81
      %v112 = vadd.f32 %v110, %v111
      %v113 = vadd.f32 %v109, %v112
      %114 = vst [vmem:[%s108] sm:$0xff] %v113
      %s115 = scalar_lea.vmem [#allocation2], 16
      %v116 = vld [vmem:[%s115] sm:$0xff]
      %v117 = vadd.f32 %v100, %v101
      %v118 = vadd.f32 %v116, %v117
      %119 = vst [vmem:[%s115] sm:$0xff] %v118
    $region25: #{tpu_custom_call.1} parent=1 // pred_fallthru
      _
    %p120 = scmp.gt.s32.totalorder %s73, 16
    // Predicated region
    $region26: #{tpu_custom_call.1} parent=1 // pred_check
      %p121 = pneg %p120
    $region27: #{tpu_custom_call.1} parent=1 // pred_check_branch
      %123 = sbr.rel (%p121) target = $region29
    $region28: #{tpu_custom_call.1} parent=1 // pred_region
      %v124 = vlaneseq
      %v125 = vshrl.u32 %v124, 7
      %v126 = vadd.s32 %v125, 8
      %v127 = vstv %s72
      %v128 = vadd.s32 %v125, %v127
      %v129 = vadd.s32 %v126, %v127
      %vm130 = vcmp.lt.s32.totalorder %v128, 16
      %vm131 = vcmp.lt.s32.totalorder %v129, 16
      %v132 = vld [vmem:[#allocation3] sm:$0xff]
      %v133 = vld [vmem:[#allocation3 + $0x8] sm:$0xff]
      %v134 = vsel %vm130, %v132, 0.0
      %v135 = vsel %vm131, %v133, 0.0
      %v136 = vld [vmem:[#allocation6] sm:$0xff]
      %v137 = vld [vmem:[#allocation6 + $0x8] sm:$0xff]
      %v138 = vsel %vm130, %v136, 0.0
      %v139 = vsel %vm131, %v137, 0.0
      %v140 = vlog2.pop %v134
      %v141 = vmul.f32 %v140, 0.6931472
      %v142 = vlog2.pop %v135
      %v143 = vmul.f32 %v142, 0.6931472
      %v144 = vmax.f32 %v141, -100.0
      %v145 = vmax.f32 %v143, -100.0
      %v146 = vsub.f32 1.0, %v134
      %v147 = vsub.f32 1.0, %v135
      %v148 = vlog2.pop %v146
      %v149 = vmul.f32 %v148, 0.6931472
      %v150 = vlog2.pop %v147
      %v151 = vmul.f32 %v150, 0.6931472
      %v152 = vmax.f32 %v149, -100.0
      %v153 = vmax.f32 %v151, -100.0
      %v154 = vsub.f32 %v144, %v152
      %v155 = vsub.f32 %v145, %v153
      %v156 = vmul.f32 %v138, %v154
      %v157 = vmul.f32 %v139, %v155
      %v158 = vadd.f32 %v152, %v156
      %v159 = vadd.f32 %v153, %v157
      %v160 = vld [vmem:[#allocation2] sm:$0xff]
      %v161 = vmul.f32 %v134, %v138
      %v162 = vmul.f32 %v135, %v139
      %v163 = vadd.f32 %v161, %v162
      %v164 = vadd.f32 %v160, %v163
      %165 = vst [vmem:[#allocation2] sm:$0xff] %v164
      %s166 = scalar_lea.vmem [#allocation2], 8
      %v167 = vld [vmem:[%s166] sm:$0xff]
      %v168 = vadd.f32 %v134, %v138
      %v169 = vadd.f32 %v135, %v139
      %v170 = vadd.f32 %v168, %v169
      %v171 = vadd.f32 %v167, %v170
      %172 = vst [vmem:[%s166] sm:$0xff] %v171
      %s173 = scalar_lea.vmem [#allocation2], 16
      %v174 = vld [vmem:[%s173] sm:$0xff]
      %v175 = vadd.f32 %v158, %v159
      %v176 = vadd.f32 %v174, %v175
      %177 = vst [vmem:[%s173] sm:$0xff] %v176
    $region29: #{tpu_custom_call.1} parent=1 // pred_fallthru
      _
    // Predicated region
    $region30: #{tpu_custom_call.1} parent=1 // pred_check
      %p178 = pneg %p64
    $region31: #{tpu_custom_call.1} parent=1 // pred_check_branch
      %180 = sbr.rel (%p178) target = $region33
    $region32: #{tpu_custom_call.1} parent=1 // pred_region
      %v181 = vld [vmem:[#allocation2] sm:$0xff]
      %v182 = vld [vmem:[#allocation2 + $0x8] sm:$0xff]
      %v183 = vld [vmem:[#allocation2 + $0x10] sm:$0xff]
      %184 = vst [vmem:[#allocation8] sm:$0xff] %v181
      %185 = vst [vmem:[#allocation8 + $0x8] sm:$0xff] %v182
      %186 = vst [vmem:[#allocation8 + $0x10] sm:$0xff] %v183
    $region33: #{tpu_custom_call.1} parent=1 // pred_fallthru
      _
    // Predicated region
    $region34: #{tpu_custom_call.1} parent=1 // pred_check
      _
    $region35: #{tpu_custom_call.1} parent=1 // pred_check_branch
      %188 = sbr.rel (0) target = $region37
    $region36: #{tpu_custom_call.1} parent=1 // pred_region
      %190 = vsyncadd [#allocation5], 0
      %s191 = sshll.u32 [#allocation8], 4
      %s192 = int_to_ptr.vmem [resolvable:$true] %s191
      %s193 = sshll.u32 %s2, 4
      %s194 = int_to_ptr.hbm [resolvable:$true] %s193
      %199 = dma.vmem_to_hbm [thread:$0]  %s192, 384, %s194, [#allocation5], 128, 128, 8
    $region37: #{tpu_custom_call.1} parent=1 // pred_fallthru
      _
    // Predicated region
    $region38: #{tpu_custom_call.1} parent=1 // pred_check
      _
    $region39: #{tpu_custom_call.1} parent=1 // pred_check_branch
      %201 = sbr.rel (0) target = $region41
    $region40: #{tpu_custom_call.1} parent=1 // pred_region
      %203 = dma.done [#allocation5], 384
    $region41: #{tpu_custom_call.1} parent=1 // pred_fallthru
      _
    %204 = vsyncpa [#allocation4], 1
    %205 = vsyncpa [#allocation7], 1
    %206 = vsyncpa [#allocation5], 1

</llo_original>
